<compile_context>
chip_gen: v7x
topology: tpu7x:2x2x1
jax: 0.10.0
libtpu: 0.0.40
codegen_flags: <defaults>
</compile_context>

<pallas_src>
import functools

import jax
import jax.numpy as jnp
from jax.experimental import pallas as pl
from jax.experimental.pallas import tpu as pltpu


def _round_up(x, m):
    return (x + m - 1) // m * m


def decoder_kernel(x_ref, w1_ref, b1_ref, w2_ref, b2_ref, out_ref):
    # In-kernel bf16 casts (free VPU work; avoids separate wrapper passes).
    x = x_ref[...].astype(jnp.bfloat16)                          # (TB, Z)
    w1 = w1_ref[...].astype(jnp.bfloat16)                        # (Z, H)
    # hidden = relu(x @ W1 + b1): MXU, f32 accumulation.
    h = jnp.dot(x, w1, preferred_element_type=jnp.float32)
    h = jnp.maximum(h + b1_ref[...], 0.0)                        # (TB, H) f32
    # predicted = sigmoid(hidden @ W2 + b2).
    w2 = w2_ref[...].astype(jnp.bfloat16)                        # (H, D)
    y = jnp.dot(h.astype(jnp.bfloat16), w2,
                preferred_element_type=jnp.float32)
    y = y + b2_ref[...]                                          # (TB, D) f32
    # Numerically stable sigmoid: exp(-|y|) in (0, 1], so 1+e in [1, 2] and
    # the approx EUP reciprocal never sees inf.
    e = jnp.exp(-jnp.abs(y))
    r = pl.reciprocal(1.0 + e, approx=True)
    sig = jnp.where(y >= 0.0, r, e * r)
    out_ref[...] = sig.astype(out_ref.dtype)


@functools.partial(jax.jit, static_argnames=("block_b", "out_dtype"))
def decoder_forward(x, w1, b1, w2, b2, *, block_b=512, out_dtype=jnp.float32):
    """x: (B, Z) f32; w1: (Z, H); b1: (1, H); w2: (H, D); b2: (1, D)."""
    B, Z = x.shape
    H, D = w2.shape

    # Batch tile: 16-aligned (clean bf16 sublane packing for the in-kernel
    # cast), capped at block_b, and capped at ~B/2 for B > 16 so the grid has
    # >= 2 steps (lets "parallel" shard across both v7x TensorCores).
    if B <= 16:
        TB = _round_up(B, 8)
    else:
        TB = min(block_b, _round_up((B + 1) // 2, 16))
    Bp = _round_up(B, TB)

    # Pad the batch only if needed (no wrapper dtype cast, no D padding).
    x_in = x if Bp == B else jnp.zeros((Bp, Z), x.dtype).at[:B].set(x)

    grid = (Bp // TB,)

    cost = pl.CostEstimate(
        flops=int(2 * Bp * (Z * H + H * D)),
        transcendentals=int(Bp * D),
        bytes_accessed=int(x_in.size * 4 + w1.size * 4 + b1.size * 4
                           + w2.size * 4 + b2.size * 4
                           + Bp * D * jnp.dtype(out_dtype).itemsize),
    )

    out_p = pl.pallas_call(
        decoder_kernel,
        out_shape=jax.ShapeDtypeStruct((Bp, D), out_dtype),
        grid=grid,
        in_specs=[
            pl.BlockSpec((TB, Z), lambda i: (i, 0)),   # x: blocked on batch
            pl.BlockSpec((Z, H), lambda i: (0, 0)),    # W1: resident
            pl.BlockSpec((1, H), lambda i: (0, 0)),    # b1: resident
            pl.BlockSpec((H, D), lambda i: (0, 0)),    # W2: resident
            pl.BlockSpec((1, D), lambda i: (0, 0)),    # b2: resident
        ],
        out_specs=pl.BlockSpec((TB, D), lambda i: (i, 0)),
        compiler_params=pltpu.CompilerParams(
            dimension_semantics=("parallel",),
        ),
        cost_estimate=cost,
    )(x_in, w1, b1, w2, b2)

    # Only slice if the batch was actually padded (no-op extra pass otherwise).
    return out_p if Bp == B else out_p[:B]


def init_linear(key, fan_in, fan_out):
    """Deterministic init mimicking torch.nn.Linear (uniform +/- 1/sqrt(fan_in)).
    Returns weight as (fan_in, fan_out) so the kernel does x @ W."""
    kw, kb = jax.random.split(key)
    bound = 1.0 / jnp.sqrt(fan_in)
    w = jax.random.uniform(kw, (fan_in, fan_out), jnp.float32, -bound, bound)
    b = jax.random.uniform(kb, (1, fan_out), jnp.float32, -bound, bound)
    return w, b


if __name__ == "__main__":
    # Small shapes consistent with the module's forward: x of shape (batch, z_dim)
    batch, z_dim, hidden_dim, output_dim = 8, 16, 32, 64

    key = jax.random.PRNGKey(0)
    kx, k1, k2 = jax.random.split(key, 3)

    x = jax.random.normal(kx, (batch, z_dim), jnp.float32)
    w1, b1 = init_linear(k1, z_dim, hidden_dim)
    w2, b2 = init_linear(k2, hidden_dim, output_dim)

    out = decoder_forward(x, w1, b1, w2, b2)
    out = jax.block_until_ready(out)
    assert out.shape == (batch, output_dim)

    # f32 PyTorch-semantics reference (loose tol: kernel uses bf16 MXU operands).
    hidden = jnp.maximum(x @ w1 + b1, 0.0)
    ref = jax.nn.sigmoid(hidden @ w2 + b2)
    assert jnp.allclose(out, ref, atol=2e-2, rtol=2e-2), float(
        jnp.max(jnp.abs(out - ref)))

    # Tighter check against a bf16-matched reference (same MXU operand dtypes).
    xb, w1b, w2b = (a.astype(jnp.bfloat16) for a in (x, w1, w2))
    hb = jnp.maximum(
        jnp.dot(xb, w1b, preferred_element_type=jnp.float32) + b1, 0.0)
    refb = jax.nn.sigmoid(
        jnp.dot(hb.astype(jnp.bfloat16), w2b,
                preferred_element_type=jnp.float32) + b2)
    assert jnp.allclose(out, refb, atol=1e-2, rtol=1e-2), float(
        jnp.max(jnp.abs(out - refb)))

    print("KERNEL_OK")
</pallas_src>

<mosaic_0001>
module attributes {stable_mosaic.version = 11 : i64} {
  func.func @decoder_kernel(%arg0: i32, %arg1: memref<8x16xf32, #tpu.memory_space<vmem>>, %arg2: memref<16x32xf32, #tpu.memory_space<vmem>>, %arg3: memref<1x32xf32, #tpu.memory_space<vmem>>, %arg4: memref<32x64xf32, #tpu.memory_space<vmem>>, %arg5: memref<1x64xf32, #tpu.memory_space<vmem>>, %arg6: memref<8x64xf32, #tpu.memory_space<vmem>>) attributes {dimension_semantics = [#tpu.dimension_semantics<parallel>], iteration_bounds = array<i64: 1>, scalar_prefetch = 0 : i64, scratch_operands = 0 : i64, tpu.core_type = #tpu.core_type<tc>, window_params = [{transform_indices = @transform_0, window_bounds = array<i64: 8, 16>}, {pipeline_mode = #tpu.pipeline_mode<synchronous>, transform_indices = @transform_1, window_bounds = array<i64: 16, 32>}, {pipeline_mode = #tpu.pipeline_mode<synchronous>, transform_indices = @transform_2, window_bounds = array<i64: 1, 32>}, {pipeline_mode = #tpu.pipeline_mode<synchronous>, transform_indices = @transform_3, window_bounds = array<i64: 32, 64>}, {pipeline_mode = #tpu.pipeline_mode<synchronous>, transform_indices = @transform_4, window_bounds = array<i64: 1, 64>}, {transform_indices = @transform_5, window_bounds = array<i64: 8, 64>}]} {
    %c0 = arith.constant 0 : index
    %c0_0 = arith.constant 0 : index
    %0 = vector.load %arg1[%c0, %c0_0] : memref<8x16xf32, #tpu.memory_space<vmem>>, vector<8x16xf32>
    %1 = arith.truncf %0 : vector<8x16xf32> to vector<8x16xbf16>
    %c0_1 = arith.constant 0 : index
    %c0_2 = arith.constant 0 : index
    %2 = vector.load %arg2[%c0_1, %c0_2] : memref<16x32xf32, #tpu.memory_space<vmem>>, vector<16x32xf32>
    %3 = arith.truncf %2 : vector<16x32xf32> to vector<16x32xbf16>
    %cst = arith.constant dense<0.000000e+00> : vector<8x32xf32>
    %4 = tpu.matmul %1, %3, %cst {dimension_numbers = #tpu.dot_dimension_numbers<[1], [0], [0], [1], [0, 0, 1, 1], [], []>} : vector<8x16xbf16>, vector<16x32xbf16>, vector<8x32xf32> -> vector<8x32xf32>
    %c0_3 = arith.constant 0 : index
    %c0_4 = arith.constant 0 : index
    %5 = vector.load %arg3[%c0_3, %c0_4] : memref<1x32xf32, #tpu.memory_space<vmem>>, vector<1x32xf32>
    %6 = vector.broadcast %5 : vector<1x32xf32> to vector<8x32xf32>
    %7 = arith.addf %4, %6 : vector<8x32xf32>
    %cst_5 = arith.constant 0.000000e+00 : f32
    %8 = vector.broadcast %cst_5 : f32 to vector<8x32xf32>
    %9 = arith.maximumf %7, %8 : vector<8x32xf32>
    %c0_6 = arith.constant 0 : index
    %c0_7 = arith.constant 0 : index
    %10 = vector.load %arg4[%c0_6, %c0_7] : memref<32x64xf32, #tpu.memory_space<vmem>>, vector<32x64xf32>
    %11 = arith.truncf %10 : vector<32x64xf32> to vector<32x64xbf16>
    %12 = arith.truncf %9 : vector<8x32xf32> to vector<8x32xbf16>
    %cst_8 = arith.constant dense<0.000000e+00> : vector<8x64xf32>
    %13 = tpu.matmul %12, %11, %cst_8 {dimension_numbers = #tpu.dot_dimension_numbers<[1], [0], [0], [1], [0, 0, 1, 1], [], []>} : vector<8x32xbf16>, vector<32x64xbf16>, vector<8x64xf32> -> vector<8x64xf32>
    %c0_9 = arith.constant 0 : index
    %c0_10 = arith.constant 0 : index
    %14 = vector.load %arg5[%c0_9, %c0_10] : memref<1x64xf32, #tpu.memory_space<vmem>>, vector<1x64xf32>
    %15 = vector.broadcast %14 : vector<1x64xf32> to vector<8x64xf32>
    %16 = arith.addf %13, %15 : vector<8x64xf32>
    %17 = math.absf %16 : vector<8x64xf32>
    %cst_11 = arith.constant 0.000000e+00 : f32
    %18 = vector.broadcast %cst_11 : f32 to vector<8x64xf32>
    %19 = arith.subf %18, %17 : vector<8x64xf32>
    %20 = math.exp %19 : vector<8x64xf32>
    %cst_12 = arith.constant 1.000000e+00 : f32
    %21 = vector.broadcast %cst_12 : f32 to vector<8x64xf32>
    %22 = arith.addf %21, %20 : vector<8x64xf32>
    %23 = tpu.reciprocal %22 {approx = true} : vector<8x64xf32> -> vector<8x64xf32>
    %cst_13 = arith.constant 0.000000e+00 : f32
    %24 = vector.broadcast %cst_13 : f32 to vector<8x64xf32>
    %25 = arith.cmpf oge, %16, %24 : vector<8x64xf32>
    %26 = arith.mulf %20, %23 : vector<8x64xf32>
    %27 = arith.select %25, %23, %26 : vector<8x64xi1>, vector<8x64xf32>
    %c0_14 = arith.constant 0 : index
    %c0_15 = arith.constant 0 : index
    %28 = vector.load %arg6[%c0_14, %c0_15] : memref<8x64xf32, #tpu.memory_space<vmem>>, vector<8x64xf32>
    tpu.vector_store %arg6[%c0_14, %c0_15], %27 {strides = array<i32>} : memref<8x64xf32, #tpu.memory_space<vmem>>, vector<8x64xf32>,
    return
  }
  func.func @transform_0(%arg0: i32) -> (i32, i32) {
    %c0_i32 = arith.constant 0 : i32
    %c0_i32_0 = arith.constant 0 : i32
    return %arg0, %c0_i32 : i32, i32
  }
  func.func @transform_1(%arg0: i32) -> (i32, i32) {
    %c0_i32 = arith.constant 0 : i32
    %c0_i32_0 = arith.constant 0 : i32
    %c0_i32_1 = arith.constant 0 : i32
    return %c0_i32, %c0_i32_0 : i32, i32
  }
  func.func @transform_2(%arg0: i32) -> (i32, i32) {
    %c0_i32 = arith.constant 0 : i32
    %c0_i32_0 = arith.constant 0 : i32
    %c0_i32_1 = arith.constant 0 : i32
    return %c0_i32, %c0_i32_0 : i32, i32
  }
  func.func @transform_3(%arg0: i32) -> (i32, i32) {
    %c0_i32 = arith.constant 0 : i32
    %c0_i32_0 = arith.constant 0 : i32
    %c0_i32_1 = arith.constant 0 : i32
    return %c0_i32, %c0_i32_0 : i32, i32
  }
  func.func @transform_4(%arg0: i32) -> (i32, i32) {
    %c0_i32 = arith.constant 0 : i32
    %c0_i32_0 = arith.constant 0 : i32
    %c0_i32_1 = arith.constant 0 : i32
    return %c0_i32, %c0_i32_0 : i32, i32
  }
  func.func @transform_5(%arg0: i32) -> (i32, i32) {
    %c0_i32 = arith.constant 0 : i32
    %c0_i32_0 = arith.constant 0 : i32
    return %arg0, %c0_i32 : i32, i32
  }
}

</mosaic_0001>

<llo_original>
// kernel: decoder_forward.1
$region0: #{decoder_forward.1}
  #allocation0 [shape = 'u32[]', space=smem, size = 0x4, offset = 0x4, fixed_abs, tag = 'smem constant byte address 0x4 - core index']
  #allocation1 [shape = 'u32[144,128]{1,0:T(1,128)}', space=vmem, size = 0x12000, scoped, tag = 'internal scratch']
  %s0 = inlined_call_operand.hbm [shape: f32[8,16], index: 0, kind: input, shape index: {}]
  %s1 = inlined_call_operand.hbm [shape: f32[16,32], index: 1, kind: input, shape index: {}]
  %s2 = inlined_call_operand.vmem [shape: f32[1,32], index: 2, kind: input, shape index: {}]
  %s3 = inlined_call_operand.hbm [shape: f32[32,64], index: 3, kind: input, shape index: {}]
  %s4 = inlined_call_operand.vmem [shape: f32[1,64], index: 4, kind: input, shape index: {}]
  %s5 = inlined_call_operand.hbm [shape: f32[8,64], index: 5, kind: output, shape index: {}]
  %s6 = sld [smem:[#allocation0]]
  $region42: #{decoder_forward.1} parent=0
    _
  %s8 = ssub.s32 1, %s6
  %s9 = scalar_select 0, %s8, %s6
  $region1: #{decoder_forward.1} parent=0
    #allocation2 [shape = 'u8[4096]{0}', space=vmem, size = 0x1000, scoped, tag = 'input window, operand 0, single buffered']
    #allocation3 [shape = 's32[1]{0}', space=sflag, size = 0x4, scoped, tag = 'scoped memory for decoder_forward.1']
    #allocation4 [shape = 's32[1]{0}', space=sflag, size = 0x4, scoped, tag = 'scoped memory for decoder_forward.1']
    #allocation5 [shape = 'u8[8192]{0}', space=vmem, size = 0x2000, scoped, tag = 'input window, operand 1, single buffered']
    #allocation6 [shape = 's32[1]{0}', space=sflag, size = 0x4, scoped, tag = 'scoped memory for decoder_forward.1']
    #allocation7 [shape = 'u8[16384]{0}', space=vmem, size = 0x4000, scoped, tag = 'input window, operand 3, single buffered']
    #allocation8 [shape = 'u8[4096]{0}', space=vmem, size = 0x1000, scoped, tag = 'output window, operand 0, single buffered']
    %10 = vsyncpa [#allocation3], 0
    %11 = vsyncpa [#allocation6], 0
    %12 = vsyncpa [#allocation4], 0
    // Predicated region
    $region2: #{decoder_forward.1} parent=1 // pred_check
      _
    $region3: #{decoder_forward.1} parent=1 // pred_check_branch
      %14 = sbr.rel (0) target = $region5
    $region4: #{decoder_forward.1} parent=1 // pred_region
      %s16 = ssub.s32 128, 128
      %17 = vsyncadd [#allocation3], %s16
      %s19 = sshll.u32 [#allocation2], 4
      %s20 = int_to_ptr.vmem [resolvable:$true] %s19
      %22 = dma.hbm_to_vmem [thread:$0]  %s0, 128, %s20, [#allocation3]
    $region5: #{decoder_forward.1} parent=1 // pred_fallthru
      _
    // Predicated region
    $region6: #{decoder_forward.1} parent=1 // pred_check
      _
    $region7: #{decoder_forward.1} parent=1 // pred_check_branch
      %24 = sbr.rel (0) target = $region9
    $region8: #{decoder_forward.1} parent=1 // pred_region
      %s26 = ssub.s32 256, 256
      %27 = vsyncadd [#allocation6], %s26
      %s28 = sshll.u32 [#allocation5], 4
      %s29 = int_to_ptr.vmem [resolvable:$true] %s28
      %34 = dma.hbm_to_vmem [thread:$0]  %s1, 256, %s29, [#allocation6], 128, 128, 8
    $region9: #{decoder_forward.1} parent=1 // pred_fallthru
      _
    // Predicated region
    $region10: #{decoder_forward.1} parent=1 // pred_check
      _
    $region11: #{decoder_forward.1} parent=1 // pred_check_branch
      %36 = sbr.rel (0) target = $region13
    $region12: #{decoder_forward.1} parent=1 // pred_region
      _
    $region13: #{decoder_forward.1} parent=1 // pred_fallthru
      _
    // Predicated region
    $region14: #{decoder_forward.1} parent=1 // pred_check
      _
    $region15: #{decoder_forward.1} parent=1 // pred_check_branch
      %38 = sbr.rel (0) target = $region17
    $region16: #{decoder_forward.1} parent=1 // pred_region
      %s40 = ssub.s32 512, 512
      %41 = vsyncadd [#allocation6], %s40
      %s42 = sshll.u32 [#allocation7], 4
      %s43 = int_to_ptr.vmem [resolvable:$true] %s42
      %48 = dma.hbm_to_vmem [thread:$0]  %s3, 512, %s43, [#allocation6], 128, 128, 8
    $region17: #{decoder_forward.1} parent=1 // pred_fallthru
      _
    // Predicated region
    $region18: #{decoder_forward.1} parent=1 // pred_check
      _
    $region19: #{decoder_forward.1} parent=1 // pred_check_branch
      %50 = sbr.rel (0) target = $region21
    $region20: #{decoder_forward.1} parent=1 // pred_region
      _
    $region21: #{decoder_forward.1} parent=1 // pred_fallthru
      _
    // Predicated region
    $region22: #{decoder_forward.1} parent=1 // pred_check
      _
    $region23: #{decoder_forward.1} parent=1 // pred_check_branch
      %52 = sbr.rel (0) target = $region25
    $region24: #{decoder_forward.1} parent=1 // pred_region
      %53 = dma.done [#allocation3], 128
    $region25: #{decoder_forward.1} parent=1 // pred_fallthru
      _
    // Predicated region
    $region26: #{decoder_forward.1} parent=1 // pred_check
      _
    $region27: #{decoder_forward.1} parent=1 // pred_check_branch
      %55 = sbr.rel (0) target = $region29
    $region28: #{decoder_forward.1} parent=1 // pred_region
      %56 = dma.done [#allocation6], 256
    $region29: #{decoder_forward.1} parent=1 // pred_fallthru
      _
    // Predicated region
    $region30: #{decoder_forward.1} parent=1 // pred_check
      _
    $region31: #{decoder_forward.1} parent=1 // pred_check_branch
      %58 = sbr.rel (0) target = $region33
    $region32: #{decoder_forward.1} parent=1 // pred_region
      %59 = dma.done [#allocation6], 512
    $region33: #{decoder_forward.1} parent=1 // pred_fallthru
      _
    %v61 = vld [vmem:[#allocation2] sm:$0xff]
    %v62 = vpack.c.bf16 %v61, %v61
    %v63 = vld [vmem:[#allocation5] sm:$0xff]
    %v64 = vld [vmem:[#allocation5 + $0x8] sm:$0xff]
    %v65 = vpack.c.bf16 %v64, %v63
    %v66 = vld [vmem:[%s2] sm:$0x1]
    %v68 = vlaneseq
    %v69 = vshrl.u32 %v68, 7
    %v70 = vsub.s32 0, %v69
    %v71 = vrot.slane %v66, %v70
    %vm73 = vcmask 130048
    %v75 = vsel %vm73, %v62, 0
    %77 = vmatprep.subr.bf16.mxu0 0
    %78 = vmatpush1.bf16.msra.mxu0 %v65
    %79 = vmatprep.subr.bf16.mxu0 0
    %80 = vmatpush1.bf16.msra.mxu0 0
    %81 = vmatprep.subr.bf16.mxu0 0
    %82 = vmatpush1.bf16.msra.mxu0 0
    %83 = vmatprep.subr.bf16.mxu0 0
    %84 = vmatpush1.bf16.msra.mxu0 0
    %85 = vmatprep.subr.bf16.mxu0 0
    %86 = vmatpush1.bf16.msra.mxu0 0
    %87 = vmatprep.subr.bf16.mxu0 0
    %88 = vmatpush1.bf16.msra.mxu0 0
    %89 = vmatprep.subr.bf16.mxu0 0
    %90 = vmatpush1.bf16.msra.mxu0 0
    %91 = vmatprep.subr.bf16.mxu0 0
    %92 = vmatpush1.bf16.msra.mxu0 0
    %93 = vmatprep.subr.bf16.mxu0 0
    %94 = vmatpush1.bf16.msra.mxu0 0
    %95 = vmatprep.subr.bf16.mxu0 0
    %96 = vmatpush1.bf16.msra.mxu0 0
    %97 = vmatprep.subr.bf16.mxu0 0
    %98 = vmatpush1.bf16.msra.mxu0 0
    %99 = vmatprep.subr.bf16.mxu0 0
    %100 = vmatpush1.bf16.msra.mxu0 0
    %101 = vmatprep.subr.bf16.mxu0 0
    %102 = vmatpush1.bf16.msra.mxu0 0
    %103 = vmatprep.subr.bf16.mxu0 0
    %104 = vmatpush1.bf16.msra.mxu0 0
    %105 = vmatprep.subr.bf16.mxu0 0
    %106 = vmatpush1.bf16.msra.mxu0 0
    %107 = vmatprep.subr.bf16.mxu0 0
    %108 = vmatpush1.bf16.msra.mxu0 0
    %109 = vmatprep.mubr.bf16.mxu0 0
    %110 = vmatmul.mubr.bf16.gmra.mrb[0].mxu0 %v75
    %v111 = vpop.f32.mrb[0].mxu0
    %v112 = vadd.f32 %v71, %v111
    %v113 = vpop.f32.mrb[0].mxu0
    %v114 = vpop.f32.mrb[0].mxu0
    %v115 = vpop.f32.mrb[0].mxu0
    %116 = vdwg.mxu0
    %v117 = vmax.f32 %v112, 0.0
    %v118 = vld [vmem:[#allocation7] sm:$0xff]
    %v119 = vld [vmem:[#allocation7 + $0x8] sm:$0xff]
    %v120 = vld [vmem:[#allocation7 + $0x10] sm:$0xff]
    %v121 = vld [vmem:[#allocation7 + $0x18] sm:$0xff]
    %v122 = vpack.c.bf16 %v119, %v118
    %v123 = vpack.c.bf16 %v121, %v120
    %v124 = vpack.c.bf16 %v117, %v117
    %v125 = vld [vmem:[%s4] sm:$0x1]
    %v127 = vlaneseq
    %v128 = vshrl.u32 %v127, 7
    %v129 = vsub.s32 0, %v128
    %v130 = vrot.slane %v125, %v129
    %vm132 = vcmask 261120
    %v134 = vsel %vm132, %v124, 0
    %136 = vmatprep.subr.bf16.mxu0 0
    %137 = vmatpush1.bf16.msra.mxu0 %v122
    %138 = vmatprep.subr.bf16.mxu0 0
    %139 = vmatpush1.bf16.msra.mxu0 %v123
    %140 = vmatprep.subr.bf16.mxu0 0
    %141 = vmatpush1.bf16.msra.mxu0 0
    %142 = vmatprep.subr.bf16.mxu0 0
    %143 = vmatpush1.bf16.msra.mxu0 0
    %144 = vmatprep.subr.bf16.mxu0 0
    %145 = vmatpush1.bf16.msra.mxu0 0
    %146 = vmatprep.subr.bf16.mxu0 0
    %147 = vmatpush1.bf16.msra.mxu0 0
    %148 = vmatprep.subr.bf16.mxu0 0
    %149 = vmatpush1.bf16.msra.mxu0 0
    %150 = vmatprep.subr.bf16.mxu0 0
    %151 = vmatpush1.bf16.msra.mxu0 0
    %152 = vmatprep.subr.bf16.mxu0 0
    %153 = vmatpush1.bf16.msra.mxu0 0
    %154 = vmatprep.subr.bf16.mxu0 0
    %155 = vmatpush1.bf16.msra.mxu0 0
    %156 = vmatprep.subr.bf16.mxu0 0
    %157 = vmatpush1.bf16.msra.mxu0 0
    %158 = vmatprep.subr.bf16.mxu0 0
    %159 = vmatpush1.bf16.msra.mxu0 0
    %160 = vmatprep.subr.bf16.mxu0 0
    %161 = vmatpush1.bf16.msra.mxu0 0
    %162 = vmatprep.subr.bf16.mxu0 0
    %163 = vmatpush1.bf16.msra.mxu0 0
    %164 = vmatprep.subr.bf16.mxu0 0
    %165 = vmatpush1.bf16.msra.mxu0 0
    %166 = vmatprep.subr.bf16.mxu0 0
    %167 = vmatpush1.bf16.msra.mxu0 0
    %168 = vmatprep.mubr.bf16.mxu0 0
    %169 = vmatmul.mubr.bf16.gmra.mrb[0].mxu0 %v134
    %v170 = vpop.f32.mrb[0].mxu0
    %v171 = vadd.f32 %v130, %v170
    %v172 = vpop.f32.mrb[0].mxu0
    %v173 = vpop.f32.mrb[0].mxu0
    %v174 = vpop.f32.mrb[0].mxu0
    %175 = vdwg.mxu0
    %v176 = vand.u32 2147483647, %v171
    %v177 = vsub.f32 0.0, %v176
    %v178 = vmul.f32 %v177, 1.442695
    %v179 = vpow.pop %v178
    %v180 = vadd.f32 %v179, 1.0
    %v181 = vrcp.pop %v180
    %vm182 = vcmp.ge.f32.partialorder %v171, 0.0
    %v183 = vmul.f32 %v179, %v181
    %v184 = vsel %vm182, %v181, %v183
    %vm185 = vcmask 523264
    %186 = vst.msk [vmem:[#allocation8] sm:$0xff] %vm185, %v184
    // Predicated region
    $region34: #{decoder_forward.1} parent=1 // pred_check
      _
    $region35: #{decoder_forward.1} parent=1 // pred_check_branch
      %188 = sbr.rel (0) target = $region37
    $region36: #{decoder_forward.1} parent=1 // pred_region
      %s190 = ssub.s32 128, 128
      %191 = vsyncadd [#allocation4], %s190
      %s193 = sshll.u32 [#allocation8], 4
      %s194 = int_to_ptr.vmem [resolvable:$true] %s193
      %196 = dma.vmem_to_hbm [thread:$0]  %s194, 128, %s5, [#allocation4]
    $region37: #{decoder_forward.1} parent=1 // pred_fallthru
      _
    // Predicated region
    $region38: #{decoder_forward.1} parent=1 // pred_check
      _
    $region39: #{decoder_forward.1} parent=1 // pred_check_branch
      %198 = sbr.rel (0) target = $region41
    $region40: #{decoder_forward.1} parent=1 // pred_region
      %199 = dma.done [#allocation4], 128
    $region41: #{decoder_forward.1} parent=1 // pred_fallthru
      _
    %200 = vsyncpa [#allocation3], 1
    %201 = vsyncpa [#allocation6], 1
    %202 = vsyncpa [#allocation4], 1

</llo_original>
